<compile_context>
chip_gen: v7x
topology: tpu7x:2x2x1
jax: 0.10.0
libtpu: 0.0.40
codegen_flags: <defaults>
</compile_context>

<pallas_src>
import math

import jax
import jax.numpy as jnp
from jax import lax
from jax.experimental import pallas as pl
from jax.experimental.pallas import tpu as pltpu


# ----------------------------------------------------------------------------
# helpers
# ----------------------------------------------------------------------------
def _acosh(z):
    z = jnp.maximum(z, 1.0)
    return jnp.log(z + jnp.sqrt((z - 1.0) * (z + 1.0)))


def _vmem_capacity_bytes():
    try:
        return int(pltpu.get_tpu_info().vmem_capacity_bytes)
    except Exception:
        return None


def _compiler_params(vmem_cap):
    kw = dict(dimension_semantics=("parallel",))
    if vmem_cap is not None:
        # explicit scoped-VMEM limit with headroom under physical capacity
        # (64 MiB on v7x, 128 MiB on v5e/v6e)
        kw["vmem_limit_bytes"] = int(min(0.75 * vmem_cap, 100 * 2 ** 20))
    return pltpu.CompilerParams(**kw)


def _pick_row_tile(n, vmem_cap):
    """Target-row tile for the attention kernel, derived per TPU generation."""
    if vmem_cap is None:
        vmem_cap = 64 * 2 ** 20            # conservative (v7x-sized) budget
    budget = int(0.35 * vmem_cap)          # leave room for double buffers etc.
    per_row = 8 * 4 * n + 2 * n            # ~8 live f32 (tile,N) slabs + i8 mask
    tile = max(8, min(1024, (budget // max(per_row, 1) // 8) * 8))
    return n if n <= tile else tile


# ----------------------------------------------------------------------------
# Pallas kernel 1: fused hy_linear (nn.Linear) + Lorentz project + logmap0
#   grid over node tiles ("parallel"); writes (heads, N, Ds) / (heads, N, Ds+1)
# ----------------------------------------------------------------------------
def _make_precompute_kernel(c, heads, ds):
    sqrt_c = math.sqrt(c)

    def kernel(x_ref, w_ref, b_ref, log_ref, lor_ref):
        y = (jnp.dot(x_ref[...], w_ref[...], preferred_element_type=jnp.float32)
             + b_ref[...])                                      # (TM, heads*Ds)
        for h in range(heads):                                  # heads small & static
            yh = y[:, h * ds:(h + 1) * ds]                      # (TM, Ds)
            sq = jnp.sum(yh * yh, axis=-1, keepdims=True)
            t = jnp.sqrt(sq + c)                                # Lorentz time coord
            norm = jnp.maximum(jnp.sqrt(sq), 1e-12)
            log_sp = (sqrt_c * _acosh(t / sqrt_c) / norm) * yh  # logmap0 (space part)
            log_ref[h, :, :] = log_sp
            lor_ref[h, :, :] = jnp.concatenate([yh, t], axis=-1)   # [y, t]

    return kernel


def hgat_precompute(x, w_t, b, *, c, heads, ds, tile_m=512):
    n, cin = x.shape
    f = heads * ds
    tile_m = n if n <= tile_m else tile_m
    vmem_cap = _vmem_capacity_bytes()
    kernel = _make_precompute_kernel(c, heads, ds)
    return pl.pallas_call(
        kernel,
        grid=(pl.cdiv(n, tile_m),),
        in_specs=[
            pl.BlockSpec((tile_m, cin), lambda i: (i, 0)),
            pl.BlockSpec((cin, f), lambda i: (0, 0)),
            pl.BlockSpec((1, f), lambda i: (0, 0)),
        ],
        out_specs=(
            pl.BlockSpec((heads, tile_m, ds), lambda i: (0, i, 0)),
            pl.BlockSpec((heads, tile_m, ds + 1), lambda i: (0, i, 0)),
        ),
        out_shape=(
            jax.ShapeDtypeStruct((heads, n, ds), jnp.float32),
            jax.ShapeDtypeStruct((heads, n, ds + 1), jnp.float32),
        ),
        compiler_params=_compiler_params(vmem_cap),
    )(x, w_t, b)


# ----------------------------------------------------------------------------
# Pallas kernel 2: row-tiled hyperbolic attention + aggregation + expmap0/projx
# ----------------------------------------------------------------------------
def _make_attention_kernel(c, negative_slope, heads, ds, dh):
    sqrt_c = math.sqrt(c)
    inv_c = 1.0 / c
    cdims = (((1,), (1,)), ((), ()))   # contract last dims: (m,k) x (n,k) -> (m,n)

    def kernel(mask_ref, logj_ref, lorj_ref, logi_ref, lori_ref,
               attl_ref, attr_ref, out_ref):
        # int8 mask; every row has >= 1 nonzero entry (self loop from build_mask)
        # so softmax denominators are >= 1. Keep the softmax path f32 (-1e30 fill).
        mbool = mask_ref[...].astype(jnp.int32) != 0            # (TI, N)
        neg = jnp.float32(-1e30)
        att_l = attl_ref[...]                                   # (heads, Ds)
        att_r = attr_ref[...]
        # sign vector folds the Lorentz time term into the y_i.y_j matmul:
        #   <x_i, x_j>_L = y_i.y_j - t_i*t_j = (lor_i * sign) . lor_j,  lor = [y, t]
        sign = jnp.where(
            lax.broadcasted_iota(jnp.int32, (1, ds + 1), 1) < ds,
            jnp.float32(1.0), jnp.float32(-1.0))

        def masked_softmax(v):
            vm = jnp.where(mbool, v, neg)
            vmax = jnp.max(vm, axis=-1, keepdims=True)
            e = jnp.where(mbool, jnp.exp(vm - vmax), 0.0)
            denom = jnp.sum(e, axis=-1, keepdims=True)
            return e * pl.reciprocal(denom, approx=True)        # EUP, no NxN divide

        for h in range(heads):      # static unrolled loop: the (TI, N) mask tile
            log_j = logj_ref[h]     # is fetched once and reused across all heads
            lor_j = lorj_ref[h]
            log_i = logi_ref[h]
            lor_i = lori_ref[h]
            al = att_l[h:h + 1, :]                              # (1, Ds)
            ar = att_r[h:h + 1, :]

            # attention logits: a_ij = att_l . log_i + att_r . log_j
            s_l = jnp.sum(log_i * al, axis=-1, keepdims=True)               # (TI,1) VPU
            s_r = lax.dot_general(ar, log_j, cdims,
                                  preferred_element_type=jnp.float32)       # (1, N)
            alpha = s_l + s_r                                                # VPU bcast

            # Lorentz squared distance, single MXU pass (t folded in via sign)
            inner = lax.dot_general(lor_i * sign, lor_j, cdims,
                                    preferred_element_type=jnp.float32)     # (TI, N)
            theta = jnp.maximum(-inner * inv_c, 1.0)
            acs = _acosh(theta)
            dist = c * acs * acs

            dsoft = masked_softmax(dist)                        # softmax(dist, edge_i)
            alpha = alpha * dsoft
            alpha = jnp.where(alpha >= 0.0, alpha, negative_slope * alpha)   # leaky_relu
            asoft = masked_softmax(alpha)                       # softmax(alpha, edge_i)

            # scatter-sum of alpha * x_j == masked attention matmul (MXU)
            supp = jnp.dot(asoft, log_j, preferred_element_type=jnp.float32)  # (TI, Ds)

            # proj_tan0 (time already 0) -> act (ReLU) -> proj_tan0
            supp = jnp.maximum(supp, 0.0)

            # expmap0 + projx back onto the manifold
            r = jnp.sqrt(jnp.sum(supp * supp, axis=-1, keepdims=True))
            rs = jnp.maximum(r, 1e-12)
            e = jnp.exp(r / sqrt_c)
            out_sp = sqrt_c * (0.5 * (e - 1.0 / e)) * (supp / rs)
            out_t = jnp.sqrt(jnp.sum(out_sp * out_sp, axis=-1, keepdims=True) + c)

            # lane-dense single output: head h occupies columns [h*Dh, (h+1)*Dh)
            out_ref[:, h * dh:(h + 1) * dh] = jnp.concatenate(
                [out_t, out_sp], axis=-1)

    return kernel


def hgat_attention(mask, log_all, lor_all, att_l, att_r, *, c, dh,
                   negative_slope=0.2):
    heads, n, ds = log_all.shape
    vmem_cap = _vmem_capacity_bytes()
    tile_i = _pick_row_tile(n, vmem_cap)
    kernel = _make_attention_kernel(c, negative_slope, heads, ds, dh)
    return pl.pallas_call(
        kernel,
        grid=(pl.cdiv(n, tile_i),),
        in_specs=[
            # (TI, N) int8 mask rows: the only O(N^2) input stream
            pl.BlockSpec((tile_i, n), lambda i: (i, 0)),
            # full-N source-side tensors: constant index map -> DMA'd once
            pl.BlockSpec((heads, n, ds), lambda i: (0, 0, 0)),
            pl.BlockSpec((heads, n, ds + 1), lambda i: (0, 0, 0)),
            # target-row tiles of the same tensors (pipelined with the grid)
            pl.BlockSpec((heads, tile_i, ds), lambda i: (0, i, 0)),
            pl.BlockSpec((heads, tile_i, ds + 1), lambda i: (0, i, 0)),
            pl.BlockSpec((heads, ds), lambda i: (0, 0)),
            pl.BlockSpec((heads, ds), lambda i: (0, 0)),
        ],
        out_specs=pl.BlockSpec((tile_i, heads * dh), lambda i: (i, 0)),
        out_shape=jax.ShapeDtypeStruct((n, heads * dh), jnp.float32),
        compiler_params=_compiler_params(vmem_cap),
    )(mask, log_all, lor_all, log_all, lor_all, att_l, att_r)


# ----------------------------------------------------------------------------
# Wrapper (glue): edge preprocessing, parameter slicing
# ----------------------------------------------------------------------------
def build_mask(edge_index, n):
    # remove_self_loops + add_self_loops, densified to an int8 adjacency mask
    ei, ej = edge_index[0], edge_index[1]
    keep = (ei != ej).astype(jnp.int32)
    m = jnp.zeros((n, n), jnp.int32).at[ei, ej].max(keep)
    m = jnp.maximum(m, jnp.eye(n, dtype=jnp.int32))
    return m.astype(jnp.int8)


def hgat_conv_forward(x, edge_index, params, *, c, heads, out_channels,
                      negative_slope=0.2):
    n = x.shape[0]
    dh = out_channels // heads          # per-head Lorentz dim (incl. time coord)
    ds = dh - 1
    mask = build_mask(edge_index, n)

    # fused hy_linear (nn.Linear) + Lorentz project + logmap0, tiled over nodes
    log_all, lor_all = hgat_precompute(x, params["w_t"], params["b"],
                                       c=c, heads=heads, ds=ds)

    att = params["att"]                 # (1, heads, 2*Dh), glorot-initialized
    # the time entries of att multiply logmap0's zero time component -> drop them
    att_l = att[0, :, 1:dh]             # (heads, Ds)
    att_r = att[0, :, dh + 1:]          # (heads, Ds)

    out = hgat_attention(mask, log_all, lor_all, att_l, att_r, c=c, dh=dh,
                         negative_slope=negative_slope)
    # TODO(synk): the reference's final `.reshape(out_shape, -1)` is only
    # self-consistent for heads == 1; here heads are concatenated -> (N, heads*Dh).
    return out


# ----------------------------------------------------------------------------
# Pure-JAX reference (same math) for a correctness check
# ----------------------------------------------------------------------------
def reference_forward(x, mask, w_t, b, att, c, heads, Dh, negative_slope=0.2):
    sqrt_c = math.sqrt(c)
    N = x.shape[0]
    Ds = Dh - 1
    hi = lax.Precision.HIGHEST
    y = jnp.dot(x, w_t, precision=hi) + b[0]
    yh = y.reshape(N, heads, Ds)
    sq = jnp.sum(yh * yh, -1, keepdims=True)
    t = jnp.sqrt(sq + c)
    norm = jnp.maximum(jnp.sqrt(sq), 1e-12)
    log_sp = sqrt_c * _acosh(t / sqrt_c) / norm * yh
    attl = att[0, :, 1:Dh]
    attr = att[0, :, Dh + 1:]
    s_l = jnp.einsum('nhd,hd->hn', log_sp, attl, precision=hi)
    s_r = jnp.einsum('nhd,hd->hn', log_sp, attr, precision=hi)
    alpha = s_l[:, :, None] + s_r[:, None, :]
    inner = (jnp.einsum('ihd,jhd->hij', yh, yh, precision=hi)
             - jnp.einsum('ihx,jhx->hij', t, t, precision=hi))
    a = _acosh(jnp.maximum(-inner / c, 1.0))
    dist = c * a * a
    m = mask[None] > 0

    def msoftmax(v):
        vm = jnp.where(m, v, -1e30)
        vmax = jnp.max(vm, -1, keepdims=True)
        e = jnp.where(m, jnp.exp(vm - vmax), 0.0)
        return e / jnp.sum(e, -1, keepdims=True)

    dsoft = msoftmax(dist)
    alpha = alpha * dsoft
    alpha = jnp.where(alpha >= 0, alpha, negative_slope * alpha)
    asoft = msoftmax(alpha)
    supp = jnp.einsum('hij,jhd->hid', asoft, log_sp, precision=hi)
    supp = jnp.maximum(supp, 0.0)
    r = jnp.sqrt(jnp.sum(supp * supp, -1, keepdims=True))
    rs = jnp.maximum(r, 1e-12)
    e = jnp.exp(r / sqrt_c)
    out_sp = sqrt_c * 0.5 * (e - 1.0 / e) * supp / rs
    out_t = jnp.sqrt(jnp.sum(out_sp * out_sp, -1, keepdims=True) + c)
    out = jnp.concatenate([out_t, out_sp], -1)
    return out.transpose(1, 0, 2).reshape(N, heads * Dh)


# ----------------------------------------------------------------------------
if __name__ == "__main__":
    key = jax.random.PRNGKey(0)
    N, Cin, out_channels, heads = 16, 8, 16, 2
    c = 1.0
    Dh = out_channels // heads
    Ds = Dh - 1
    F = heads * Ds

    k1, k2, k3, k4 = jax.random.split(key, 4)
    x = jax.random.normal(k1, (N, Cin), jnp.float32)

    # deterministic parameter init
    bound = 1.0 / math.sqrt(Cin)                       # nn.Linear-style
    w_t = jax.random.uniform(k2, (Cin, F), jnp.float32, -bound, bound)
    b = jax.random.uniform(k3, (1, F), jnp.float32, -bound, bound)
    stdv = math.sqrt(6.0 / (heads + 2 * Dh))           # glorot for att
    att = jax.random.uniform(k4, (1, heads, 2 * Dh), jnp.float32, -stdv, stdv)
    bias = jnp.zeros((out_channels,), jnp.float32)     # declared in module, unused in forward

    # deterministic ring graph + a couple of explicit self loops (exercises removal)
    idx = jnp.arange(N, dtype=jnp.int32)
    src = jnp.concatenate([idx, (idx + 1) % N, jnp.array([0, 3], jnp.int32)])
    dst = jnp.concatenate([(idx + 1) % N, idx, jnp.array([0, 3], jnp.int32)])
    edge_index = jnp.stack([src, dst])                 # (2, 34)

    params = {"w_t": w_t, "b": b, "att": att, "bias": bias}

    out = hgat_conv_forward(x, edge_index, params, c=c, heads=heads,
                            out_channels=out_channels)
    out = jax.block_until_ready(out)

    ref = reference_forward(x, build_mask(edge_index, N), w_t, b, att,
                            c, heads, Dh)

    assert out.shape == (N, heads * Dh)
    assert bool(jnp.all(jnp.isfinite(out)))
    assert bool(jnp.allclose(out, ref, rtol=5e-3, atol=5e-3))
    print("KERNEL_OK")
</pallas_src>

<mosaic_0001>
module attributes {stable_mosaic.version = 11 : i64} {
  func.func @kernel(%arg0: i32, %arg1: memref<16x8xf32, #tpu.memory_space<vmem>>, %arg2: memref<8x14xf32, #tpu.memory_space<vmem>>, %arg3: memref<1x14xf32, #tpu.memory_space<vmem>>, %arg4: memref<2x16x7xf32, #tpu.memory_space<vmem>>, %arg5: memref<2x16x8xf32, #tpu.memory_space<vmem>>) attributes {dimension_semantics = [#tpu.dimension_semantics<parallel>], iteration_bounds = array<i64: 1>, scalar_prefetch = 0 : i64, scratch_operands = 0 : i64, tpu.core_type = #tpu.core_type<tc>, window_params = [{transform_indices = @transform_0, window_bounds = array<i64: 16, 8>}, {pipeline_mode = #tpu.pipeline_mode<synchronous>, transform_indices = @transform_1, window_bounds = array<i64: 8, 14>}, {pipeline_mode = #tpu.pipeline_mode<synchronous>, transform_indices = @transform_2, window_bounds = array<i64: 1, 14>}, {transform_indices = @transform_3, window_bounds = array<i64: 2, 16, 7>}, {transform_indices = @transform_4, window_bounds = array<i64: 2, 16, 8>}]} {
    %c0 = arith.constant 0 : index
    %c0_0 = arith.constant 0 : index
    %0 = vector.load %arg1[%c0, %c0_0] : memref<16x8xf32, #tpu.memory_space<vmem>>, vector<16x8xf32>
    %c0_1 = arith.constant 0 : index
    %c0_2 = arith.constant 0 : index
    %1 = vector.load %arg2[%c0_1, %c0_2] : memref<8x14xf32, #tpu.memory_space<vmem>>, vector<8x14xf32>
    %cst = arith.constant dense<0.000000e+00> : vector<16x14xf32>
    %2 = tpu.matmul %0, %1, %cst {dimension_numbers = #tpu.dot_dimension_numbers<[1], [0], [0], [1], [0, 0, 1, 1], [], []>} : vector<16x8xf32>, vector<8x14xf32>, vector<16x14xf32> -> vector<16x14xf32>
    %c0_3 = arith.constant 0 : index
    %c0_4 = arith.constant 0 : index
    %3 = vector.load %arg3[%c0_3, %c0_4] : memref<1x14xf32, #tpu.memory_space<vmem>>, vector<1x14xf32>
    %4 = vector.broadcast %3 : vector<1x14xf32> to vector<16x14xf32>
    %5 = arith.addf %2, %4 : vector<16x14xf32>
    %6 = vector.extract_strided_slice %5 {offsets = [0, 0], sizes = [16, 7], strides = [1, 1]} : vector<16x14xf32> to vector<16x7xf32>
    %7 = arith.mulf %6, %6 : vector<16x7xf32>
    %cst_5 = arith.constant dense<0.000000e+00> : vector<16xf32>
    %8 = vector.multi_reduction <add>, %7, %cst_5 [1] : vector<16x7xf32> to vector<16xf32>
    %9 = vector.shape_cast %8 : vector<16xf32> to vector<16x1xf32>
    %cst_6 = arith.constant 1.000000e+00 : f32
    %10 = vector.broadcast %cst_6 : f32 to vector<16x1xf32>
    %11 = arith.addf %9, %10 : vector<16x1xf32>
    %12 = math.sqrt %11 : vector<16x1xf32>
    %13 = math.sqrt %9 : vector<16x1xf32>
    %cst_7 = arith.constant 9.99999996E-13 : f32
    %14 = vector.broadcast %cst_7 : f32 to vector<16x1xf32>
    %15 = arith.maximumf %13, %14 : vector<16x1xf32>
    %cst_8 = arith.constant 1.000000e+00 : f32
    %16 = vector.broadcast %cst_8 : f32 to vector<16x1xf32>
    %17 = arith.divf %12, %16 : vector<16x1xf32>
    %cst_9 = arith.constant 1.000000e+00 : f32
    %18 = vector.broadcast %cst_9 : f32 to vector<16x1xf32>
    %19 = arith.maximumf %17, %18 : vector<16x1xf32>
    %cst_10 = arith.constant 1.000000e+00 : f32
    %20 = vector.broadcast %cst_10 : f32 to vector<16x1xf32>
    %21 = arith.subf %19, %20 : vector<16x1xf32>
    %cst_11 = arith.constant 1.000000e+00 : f32
    %22 = vector.broadcast %cst_11 : f32 to vector<16x1xf32>
    %23 = arith.addf %19, %22 : vector<16x1xf32>
    %24 = arith.mulf %21, %23 : vector<16x1xf32>
    %25 = math.sqrt %24 : vector<16x1xf32>
    %26 = arith.addf %19, %25 : vector<16x1xf32>
    %27 = math.log %26 : vector<16x1xf32>
    %cst_12 = arith.constant 1.000000e+00 : f32
    %28 = vector.broadcast %cst_12 : f32 to vector<16x1xf32>
    %29 = arith.mulf %28, %27 : vector<16x1xf32>
    %30 = arith.divf %29, %15 : vector<16x1xf32>
    %31 = vector.broadcast %30 : vector<16x1xf32> to vector<16x7xf32>
    %32 = arith.mulf %31, %6 : vector<16x7xf32>
    %c0_13 = arith.constant 0 : index
    %c0_14 = arith.constant 0 : index
    %c0_15 = arith.constant 0 : index
    %33 = vector.load %arg4[%c0_13, %c0_14, %c0_15] : memref<2x16x7xf32, #tpu.memory_space<vmem>>, vector<1x16x7xf32>
    %34 = vector.shape_cast %33 : vector<1x16x7xf32> to vector<16x7xf32>
    %35 = vector.shape_cast %32 : vector<16x7xf32> to vector<1x16x7xf32>
    tpu.vector_store %arg4[%c0_13, %c0_14, %c0_15], %35 {strides = array<i32>} : memref<2x16x7xf32, #tpu.memory_space<vmem>>, vector<1x16x7xf32>,
    %36 = tpu.concatenate %6, %12 in 1 : vector<16x7xf32>, vector<16x1xf32> -> vector<16x8xf32>
    %c0_16 = arith.constant 0 : index
    %c0_17 = arith.constant 0 : index
    %c0_18 = arith.constant 0 : index
    %37 = vector.load %arg5[%c0_16, %c0_17, %c0_18] : memref<2x16x8xf32, #tpu.memory_space<vmem>>, vector<1x16x8xf32>
    %38 = vector.shape_cast %37 : vector<1x16x8xf32> to vector<16x8xf32>
    %39 = vector.shape_cast %36 : vector<16x8xf32> to vector<1x16x8xf32>
    tpu.vector_store %arg5[%c0_16, %c0_17, %c0_18], %39 {strides = array<i32>} : memref<2x16x8xf32, #tpu.memory_space<vmem>>, vector<1x16x8xf32>,
    %40 = vector.extract_strided_slice %5 {offsets = [0, 7], sizes = [16, 7], strides = [1, 1]} : vector<16x14xf32> to vector<16x7xf32>
    %41 = arith.mulf %40, %40 : vector<16x7xf32>
    %cst_19 = arith.constant dense<0.000000e+00> : vector<16xf32>
    %42 = vector.multi_reduction <add>, %41, %cst_19 [1] : vector<16x7xf32> to vector<16xf32>
    %43 = vector.shape_cast %42 : vector<16xf32> to vector<16x1xf32>
    %cst_20 = arith.constant 1.000000e+00 : f32
    %44 = vector.broadcast %cst_20 : f32 to vector<16x1xf32>
    %45 = arith.addf %43, %44 : vector<16x1xf32>
    %46 = math.sqrt %45 : vector<16x1xf32>
    %47 = math.sqrt %43 : vector<16x1xf32>
    %cst_21 = arith.constant 9.99999996E-13 : f32
    %48 = vector.broadcast %cst_21 : f32 to vector<16x1xf32>
    %49 = arith.maximumf %47, %48 : vector<16x1xf32>
    %cst_22 = arith.constant 1.000000e+00 : f32
    %50 = vector.broadcast %cst_22 : f32 to vector<16x1xf32>
    %51 = arith.divf %46, %50 : vector<16x1xf32>
    %cst_23 = arith.constant 1.000000e+00 : f32
    %52 = vector.broadcast %cst_23 : f32 to vector<16x1xf32>
    %53 = arith.maximumf %51, %52 : vector<16x1xf32>
    %cst_24 = arith.constant 1.000000e+00 : f32
    %54 = vector.broadcast %cst_24 : f32 to vector<16x1xf32>
    %55 = arith.subf %53, %54 : vector<16x1xf32>
    %cst_25 = arith.constant 1.000000e+00 : f32
    %56 = vector.broadcast %cst_25 : f32 to vector<16x1xf32>
    %57 = arith.addf %53, %56 : vector<16x1xf32>
    %58 = arith.mulf %55, %57 : vector<16x1xf32>
    %59 = math.sqrt %58 : vector<16x1xf32>
    %60 = arith.addf %53, %59 : vector<16x1xf32>
    %61 = math.log %60 : vector<16x1xf32>
    %cst_26 = arith.constant 1.000000e+00 : f32
    %62 = vector.broadcast %cst_26 : f32 to vector<16x1xf32>
    %63 = arith.mulf %62, %61 : vector<16x1xf32>
    %64 = arith.divf %63, %49 : vector<16x1xf32>
    %65 = vector.broadcast %64 : vector<16x1xf32> to vector<16x7xf32>
    %66 = arith.mulf %65, %40 : vector<16x7xf32>
    %c1 = arith.constant 1 : index
    %c0_27 = arith.constant 0 : index
    %c0_28 = arith.constant 0 : index
    %67 = vector.load %arg4[%c1, %c0_27, %c0_28] : memref<2x16x7xf32, #tpu.memory_space<vmem>>, vector<1x16x7xf32>
    %68 = vector.shape_cast %67 : vector<1x16x7xf32> to vector<16x7xf32>
    %69 = vector.shape_cast %66 : vector<16x7xf32> to vector<1x16x7xf32>
    tpu.vector_store %arg4[%c1, %c0_27, %c0_28], %69 {strides = array<i32>} : memref<2x16x7xf32, #tpu.memory_space<vmem>>, vector<1x16x7xf32>,
    %70 = tpu.concatenate %40, %46 in 1 : vector<16x7xf32>, vector<16x1xf32> -> vector<16x8xf32>
    %c1_29 = arith.constant 1 : index
    %c0_30 = arith.constant 0 : index
    %c0_31 = arith.constant 0 : index
    %71 = vector.load %arg5[%c1_29, %c0_30, %c0_31] : memref<2x16x8xf32, #tpu.memory_space<vmem>>, vector<1x16x8xf32>
    %72 = vector.shape_cast %71 : vector<1x16x8xf32> to vector<16x8xf32>
    %73 = vector.shape_cast %70 : vector<16x8xf32> to vector<1x16x8xf32>
    tpu.vector_store %arg5[%c1_29, %c0_30, %c0_31], %73 {strides = array<i32>} : memref<2x16x8xf32, #tpu.memory_space<vmem>>, vector<1x16x8xf32>,
    return
  }
  func.func @transform_0(%arg0: i32) -> (i32, i32) {
    %c0_i32 = arith.constant 0 : i32
    %c0_i32_0 = arith.constant 0 : i32
    return %arg0, %c0_i32 : i32, i32
  }
  func.func @transform_1(%arg0: i32) -> (i32, i32) {
    %c0_i32 = arith.constant 0 : i32
    %c0_i32_0 = arith.constant 0 : i32
    %c0_i32_1 = arith.constant 0 : i32
    return %c0_i32, %c0_i32_0 : i32, i32
  }
  func.func @transform_2(%arg0: i32) -> (i32, i32) {
    %c0_i32 = arith.constant 0 : i32
    %c0_i32_0 = arith.constant 0 : i32
    %c0_i32_1 = arith.constant 0 : i32
    return %c0_i32, %c0_i32_0 : i32, i32
  }
  func.func @transform_3(%arg0: i32) -> (i32, i32, i32) {
    %c0_i32 = arith.constant 0 : i32
    %c0_i32_0 = arith.constant 0 : i32
    %c0_i32_1 = arith.constant 0 : i32
    return %c0_i32, %arg0, %c0_i32_0 : i32, i32, i32
  }
  func.func @transform_4(%arg0: i32) -> (i32, i32, i32) {
    %c0_i32 = arith.constant 0 : i32
    %c0_i32_0 = arith.constant 0 : i32
    %c0_i32_1 = arith.constant 0 : i32
    return %c0_i32, %arg0, %c0_i32_0 : i32, i32, i32
  }
}

</mosaic_0001>

<llo_original>
// kernel: tpu_custom_call.1
$region0: #{tpu_custom_call.1}
  #allocation0 [shape = 'u32[]', space=smem, size = 0x4, offset = 0x4, fixed_abs, tag = 'smem constant byte address 0x4 - core index']
  #allocation1 [shape = 'u32[144,128]{1,0:T(1,128)}', space=vmem, size = 0x12000, scoped, tag = 'internal scratch']
  %s0 = inlined_call_operand.vmem [shape: f32[16,8], index: 0, kind: input, shape index: {}]
  %s1 = inlined_call_operand.vmem [shape: f32[8,14], index: 1, kind: input, shape index: {}]
  %s2 = inlined_call_operand.vmem [shape: f32[1,14], index: 2, kind: input, shape index: {}]
  %s3 = inlined_call_operand.vmem [shape: f32[2,16,7], index: 3, kind: output, shape index: {0}]
  %s4 = inlined_call_operand.vmem [shape: f32[2,16,8], index: 4, kind: output, shape index: {1}]
  %5 = xla_tuple %s3, %s4
  %s6 = sld [smem:[#allocation0]]
  $region30: #{tpu_custom_call.1} parent=0
    _
  %s8 = ssub.s32 1, %s6
  %s9 = scalar_select 0, %s8, %s6
  // Predicated region
  $region2: #{tpu_custom_call.1} parent=0 // pred_check
    _
  $region3: #{tpu_custom_call.1} parent=0 // pred_check_branch
    %11 = sbr.rel (0) target = $region5
  $region4: #{tpu_custom_call.1} parent=0 // pred_region
    _
  $region5: #{tpu_custom_call.1} parent=0 // pred_fallthru
    _
  // Predicated region
  $region6: #{tpu_custom_call.1} parent=0 // pred_check
    _
  $region7: #{tpu_custom_call.1} parent=0 // pred_check_branch
    %13 = sbr.rel (0) target = $region9
  $region8: #{tpu_custom_call.1} parent=0 // pred_region
    _
  $region9: #{tpu_custom_call.1} parent=0 // pred_fallthru
    _
  // Predicated region
  $region10: #{tpu_custom_call.1} parent=0 // pred_check
    _
  $region11: #{tpu_custom_call.1} parent=0 // pred_check_branch
    %15 = sbr.rel (0) target = $region13
  $region12: #{tpu_custom_call.1} parent=0 // pred_region
    _
  $region13: #{tpu_custom_call.1} parent=0 // pred_fallthru
    _
  %v16 = vld [vmem:[%s0] sm:$0xff]
  %v17 = vld [vmem:[%s0 + $0x8] sm:$0xff]
  %v18 = vld [vmem:[%s1] sm:$0xff]
  %v19 = vld [vmem:[%s2] sm:$0x1]
  %v21 = vlaneseq
  %v22 = vshrl.u32 %v21, 7
  %v23 = vsub.s32 0, %v22
  %v24 = vrot.slane %v19, %v23
  %vm26 = vcmask 64512
  %v28 = vsel %vm26, %v16, 0
  %v31 = vsel %vm26, %v17, 0
  %33 = vmatprep.subr.mxu0 0.0
  %34 = vmatpush1.msra.mxu0 %v18
  %35 = vmatprep.subr.mxu0 0.0
  %36 = vmatpush1.msra.mxu0 0.0
  %37 = vmatprep.subr.mxu0 0.0
  %38 = vmatpush1.msra.mxu0 0.0
  %39 = vmatprep.subr.mxu0 0.0
  %40 = vmatpush1.msra.mxu0 0.0
  %41 = vmatprep.subr.mxu0 0.0
  %42 = vmatpush1.msra.mxu0 0.0
  %43 = vmatprep.subr.mxu0 0.0
  %44 = vmatpush1.msra.mxu0 0.0
  %45 = vmatprep.subr.mxu0 0.0
  %46 = vmatpush1.msra.mxu0 0.0
  %47 = vmatprep.subr.mxu0 0.0
  %48 = vmatpush1.msra.mxu0 0.0
  %49 = vmatprep.subr.mxu0 0.0
  %50 = vmatpush1.msra.mxu0 0.0
  %51 = vmatprep.subr.mxu0 0.0
  %52 = vmatpush1.msra.mxu0 0.0
  %53 = vmatprep.subr.mxu0 0.0
  %54 = vmatpush1.msra.mxu0 0.0
  %55 = vmatprep.subr.mxu0 0.0
  %56 = vmatpush1.msra.mxu0 0.0
  %57 = vmatprep.subr.mxu0 0.0
  %58 = vmatpush1.msra.mxu0 0.0
  %59 = vmatprep.subr.mxu0 0.0
  %60 = vmatpush1.msra.mxu0 0.0
  %61 = vmatprep.subr.mxu0 0.0
  %62 = vmatpush1.msra.mxu0 0.0
  %63 = vmatprep.subr.mxu0 0.0
  %64 = vmatpush1.msra.mxu0 0.0
  %65 = vmatprep.subr.mxu0 0.0
  %66 = vmatpush1.msra.mxu0 0.0
  %67 = vmatprep.subr.mxu0 0.0
  %68 = vmatpush1.msra.mxu0 0.0
  %69 = vmatprep.subr.mxu0 0.0
  %70 = vmatpush1.msra.mxu0 0.0
  %71 = vmatprep.subr.mxu0 0.0
  %72 = vmatpush1.msra.mxu0 0.0
  %73 = vmatprep.subr.mxu0 0.0
  %74 = vmatpush1.msra.mxu0 0.0
  %75 = vmatprep.subr.mxu0 0.0
  %76 = vmatpush1.msra.mxu0 0.0
  %77 = vmatprep.subr.mxu0 0.0
  %78 = vmatpush1.msra.mxu0 0.0
  %79 = vmatprep.subr.mxu0 0.0
  %80 = vmatpush1.msra.mxu0 0.0
  %81 = vmatprep.subr.mxu0 0.0
  %82 = vmatpush1.msra.mxu0 0.0
  %83 = vmatprep.subr.mxu0 0.0
  %84 = vmatpush1.msra.mxu0 0.0
  %85 = vmatprep.subr.mxu0 0.0
  %86 = vmatpush1.msra.mxu0 0.0
  %87 = vmatprep.subr.mxu0 0.0
  %88 = vmatpush1.msra.mxu0 0.0
  %89 = vmatprep.subr.mxu0 0.0
  %90 = vmatpush1.msra.mxu0 0.0
  %91 = vmatprep.subr.mxu0 0.0
  %92 = vmatpush1.msra.mxu0 0.0
  %93 = vmatprep.subr.mxu0 0.0
  %94 = vmatpush1.msra.mxu0 0.0
  %95 = vmatprep.subr.mxu0 0.0
  %96 = vmatpush1.msra.mxu0 0.0
  %97 = vmatprep.mubr.f32.mxu0 0.0
  %98 = vmatmul.mubr.f32.gmra.mrb[0].mxu0 %v28
  %v99 = vpop.f32.mrb[0].mxu0
  %v100 = vadd.f32 %v24, %v99
  %v101 = vpop.f32.mrb[0].mxu0
  %102 = vmatprep.mubr.f32.mxu0 0.0
  %103 = vmatmul.mubr.f32.gmra.mrb[0].mxu0 %v31
  %v104 = vpop.f32.mrb[0].mxu0
  %v105 = vadd.f32 %v24, %v104
  %v106 = vpop.f32.mrb[0].mxu0
  %107 = vdwg.mxu0
  %v108 = vmul.f32 %v100, %v100
  %v109 = vmul.f32 %v105, %v105
  %vm110 = vcmask 56320
  %v111 = vsel %vm110, %v108, 0.0
  %112 = vadd.xlane.f32.xlu0 %v111
  %v113 = vpop.xlane.xlu0 %112
  %v114 = vsel %vm110, %v109, 0.0
  %115 = vadd.xlane.f32.xlu0 %v114
  %v116 = vpop.xlane.xlu0 %115
  %v117 = vadd.f32 %v113, 1.0
  %v118 = vadd.f32 %v116, 1.0
  %v119 = vrsqrt.pop %v117
  %v120 = vmul.f32 %v117, %v119
  %vm121 = vcmp.eq.f32.partialorder %v117, inf
  %v122 = vsel %vm121, %v117, %v120
  %vm123 = vcmp.eq.f32.partialorder %v117, 0.0
  %v124 = vand.u32 %v117, 2147483648
  %v125 = vsel %vm123, %v124, %v122
  %v126 = vrsqrt.pop %v118
  %v127 = vmul.f32 %v118, %v126
  %vm128 = vcmp.eq.f32.partialorder %v118, inf
  %v129 = vsel %vm128, %v118, %v127
  %vm130 = vcmp.eq.f32.partialorder %v118, 0.0
  %v131 = vand.u32 %v118, 2147483648
  %v132 = vsel %vm130, %v131, %v129
  %v133 = vrsqrt.pop %v113
  %v134 = vmul.f32 %v113, %v133
  %vm135 = vcmp.eq.f32.partialorder %v113, inf
  %v136 = vsel %vm135, %v113, %v134
  %vm137 = vcmp.eq.f32.partialorder %v113, 0.0
  %v138 = vand.u32 %v113, 2147483648
  %v139 = vsel %vm137, %v138, %v136
  %v140 = vrsqrt.pop %v116
  %v141 = vmul.f32 %v116, %v140
  %vm142 = vcmp.eq.f32.partialorder %v116, inf
  %v143 = vsel %vm142, %v116, %v141
  %vm144 = vcmp.eq.f32.partialorder %v116, 0.0
  %v145 = vand.u32 %v116, 2147483648
  %v146 = vsel %vm144, %v145, %v143
  %v147 = vmax.f32 %v139, 1e-12
  %v148 = vmax.f32 %v146, 1e-12
  %v149 = vmax.f32 %v125, 1.0
  %v150 = vmax.f32 %v132, 1.0
  %v151 = vsub.f32 %v149, 1.0
  %v152 = vsub.f32 %v150, 1.0
  %v153 = vadd.f32 %v149, 1.0
  %v154 = vadd.f32 %v150, 1.0
  %v155 = vmul.f32 %v151, %v153
  %v156 = vmul.f32 %v152, %v154
  %v157 = vrsqrt.pop %v155
  %v158 = vmul.f32 %v155, %v157
  %vm159 = vcmp.eq.f32.partialorder %v155, inf
  %v160 = vsel %vm159, %v155, %v158
  %vm161 = vcmp.eq.f32.partialorder %v155, 0.0
  %v162 = vand.u32 %v155, 2147483648
  %v163 = vsel %vm161, %v162, %v160
  %v164 = vrsqrt.pop %v156
  %v165 = vmul.f32 %v156, %v164
  %vm166 = vcmp.eq.f32.partialorder %v156, inf
  %v167 = vsel %vm166, %v156, %v165
  %vm168 = vcmp.eq.f32.partialorder %v156, 0.0
  %v169 = vand.u32 %v156, 2147483648
  %v170 = vsel %vm168, %v169, %v167
  %v171 = vadd.f32 %v149, %v163
  %v172 = vadd.f32 %v150, %v170
  %v173 = vlog2.pop %v171
  %v174 = vmul.f32 %v173, 0.6931472
  %v175 = vlog2.pop %v172
  %v176 = vmul.f32 %v175, 0.6931472
  %v177 = vrcp.pop %v147
  %v178 = vmul.f32 %v174, %v177
  %v179 = vrcp.pop %v148
  %v180 = vmul.f32 %v176, %v179
  %v181 = vmul.f32 %v178, %v100
  %v182 = vmul.f32 %v180, %v105
  %183 = vst.msk [vmem:[%s3] sm:$0xff] %vm110, %v181
  %184 = vst.msk [vmem:[%s3 + $0x8] sm:$0xff] %vm110, %v182
  %v185 = vsel %vm110, %v100, %v125
  %v186 = vsel %vm110, %v105, %v132
  %187 = vst.msk [vmem:[%s4] sm:$0xff] %vm26, %v185
  %188 = vst.msk [vmem:[%s4 + $0x8] sm:$0xff] %vm26, %v186
  %191 = vrot.lane.b32.xlu0 %v108, 121
  %v192 = vpop.permute.xlu0 %191
  %193 = vrot.lane.b32.xlu0 %v109, 121
  %v194 = vpop.permute.xlu0 %193
  %v197 = vsel %vm110, %v192, 0.0
  %198 = vadd.xlane.f32.xlu0 %v197
  %v199 = vpop.xlane.xlu0 %198
  %v200 = vsel %vm110, %v194, 0.0
  %201 = vadd.xlane.f32.xlu0 %v200
  %v202 = vpop.xlane.xlu0 %201
  %v203 = vadd.f32 %v199, 1.0
  %v204 = vadd.f32 %v202, 1.0
  %v205 = vrsqrt.pop %v203
  %v206 = vmul.f32 %v203, %v205
  %vm207 = vcmp.eq.f32.partialorder %v203, inf
  %v208 = vsel %vm207, %v203, %v206
  %vm209 = vcmp.eq.f32.partialorder %v203, 0.0
  %v210 = vand.u32 %v203, 2147483648
  %v211 = vsel %vm209, %v210, %v208
  %v212 = vrsqrt.pop %v204
  %v213 = vmul.f32 %v204, %v212
  %vm214 = vcmp.eq.f32.partialorder %v204, inf
  %v215 = vsel %vm214, %v204, %v213
  %vm216 = vcmp.eq.f32.partialorder %v204, 0.0
  %v217 = vand.u32 %v204, 2147483648
  %v218 = vsel %vm216, %v217, %v215
  %v219 = vrsqrt.pop %v199
  %v220 = vmul.f32 %v199, %v219
  %vm221 = vcmp.eq.f32.partialorder %v199, inf
  %v222 = vsel %vm221, %v199, %v220
  %vm223 = vcmp.eq.f32.partialorder %v199, 0.0
  %v224 = vand.u32 %v199, 2147483648
  %v225 = vsel %vm223, %v224, %v222
  %v226 = vrsqrt.pop %v202
  %v227 = vmul.f32 %v202, %v226
  %vm228 = vcmp.eq.f32.partialorder %v202, inf
  %v229 = vsel %vm228, %v202, %v227
  %vm230 = vcmp.eq.f32.partialorder %v202, 0.0
  %v231 = vand.u32 %v202, 2147483648
  %v232 = vsel %vm230, %v231, %v229
  %v233 = vmax.f32 %v225, 1e-12
  %v234 = vmax.f32 %v232, 1e-12
  %v235 = vmax.f32 %v211, 1.0
  %v236 = vmax.f32 %v218, 1.0
  %v237 = vsub.f32 %v235, 1.0
  %v238 = vsub.f32 %v236, 1.0
  %v239 = vadd.f32 %v235, 1.0
  %v240 = vadd.f32 %v236, 1.0
  %v241 = vmul.f32 %v237, %v239
  %v242 = vmul.f32 %v238, %v240
  %v243 = vrsqrt.pop %v241
  %v244 = vmul.f32 %v241, %v243
  %vm245 = vcmp.eq.f32.partialorder %v241, inf
  %v246 = vsel %vm245, %v241, %v244
  %vm247 = vcmp.eq.f32.partialorder %v241, 0.0
  %v248 = vand.u32 %v241, 2147483648
  %v249 = vsel %vm247, %v248, %v246
  %v250 = vrsqrt.pop %v242
  %v251 = vmul.f32 %v242, %v250
  %vm252 = vcmp.eq.f32.partialorder %v242, inf
  %v253 = vsel %vm252, %v242, %v251
  %vm254 = vcmp.eq.f32.partialorder %v242, 0.0
  %v255 = vand.u32 %v242, 2147483648
  %v256 = vsel %vm254, %v255, %v253
  %v257 = vadd.f32 %v235, %v249
  %v258 = vadd.f32 %v236, %v256
  %v259 = vlog2.pop %v257
  %v260 = vmul.f32 %v259, 0.6931472
  %v261 = vlog2.pop %v258
  %v262 = vmul.f32 %v261, 0.6931472
  %v263 = vrcp.pop %v233
  %v264 = vmul.f32 %v260, %v263
  %v265 = vrcp.pop %v234
  %v266 = vmul.f32 %v262, %v265
  %v267 = vmul.f32 %v264, %v100
  %v268 = vmul.f32 %v266, %v105
  %271 = vrot.lane.b32.xlu0 %v267, 121
  %v272 = vpop.permute.xlu0 %271
  %273 = vrot.lane.b32.xlu0 %v268, 121
  %v274 = vpop.permute.xlu0 %273
  %s277 = scalar_lea.vmem %s3, 16
  %278 = vst.msk [vmem:[%s277] sm:$0xff] %vm110, %v272
  %279 = vst.msk [vmem:[%s277 + $0x8] sm:$0xff] %vm110, %v274
  %282 = vrot.lane.b32.xlu0 %v100, 121
  %v283 = vpop.permute.xlu0 %282
  %284 = vrot.lane.b32.xlu0 %v105, 121
  %v285 = vpop.permute.xlu0 %284
  %v288 = vsel %vm110, %v283, %v211
  %v289 = vsel %vm110, %v285, %v218
  %s290 = scalar_lea.vmem %s4, 16
  %291 = vst.msk [vmem:[%s290] sm:$0xff] %vm26, %v288
  %292 = vst.msk [vmem:[%s290 + $0x8] sm:$0xff] %vm26, %v289
  // Predicated region
  $region14: #{tpu_custom_call.1} parent=0 // pred_check
    _
  $region15: #{tpu_custom_call.1} parent=0 // pred_check_branch
    %294 = sbr.rel (0) target = $region17
  $region16: #{tpu_custom_call.1} parent=0 // pred_region
    _
  $region17: #{tpu_custom_call.1} parent=0 // pred_fallthru
    _
  // Predicated region
  $region18: #{tpu_custom_call.1} parent=0 // pred_check
    _
  $region19: #{tpu_custom_call.1} parent=0 // pred_check_branch
    %296 = sbr.rel (0) target = $region21
  $region20: #{tpu_custom_call.1} parent=0 // pred_region
    _
  $region21: #{tpu_custom_call.1} parent=0 // pred_fallthru
    _
  // Predicated region
  $region22: #{tpu_custom_call.1} parent=0 // pred_check
    _
  $region23: #{tpu_custom_call.1} parent=0 // pred_check_branch
    %298 = sbr.rel (0) target = $region25
  $region24: #{tpu_custom_call.1} parent=0 // pred_region
    _
  $region25: #{tpu_custom_call.1} parent=0 // pred_fallthru
    _
  // Predicated region
  $region26: #{tpu_custom_call.1} parent=0 // pred_check
    _
  $region27: #{tpu_custom_call.1} parent=0 // pred_check_branch
    %300 = sbr.rel (0) target = $region29
  $region28: #{tpu_custom_call.1} parent=0 // pred_region
    _
  $region29: #{tpu_custom_call.1} parent=0 // pred_fallthru
    _

</llo_original>
